<compile_context>
chip_gen: v5e
topology: v5e:2x2
jax: 0.10.0
libtpu: 0.0.40
codegen_flags: <defaults>
</compile_context>

<pallas_src>
import functools

import jax
import jax.numpy as jnp
from jax.experimental import pallas as pl
from jax.experimental.pallas import tpu as pltpu

IN_DIM = 85
H1 = 128
H2 = 64
OUT_DIM = 2


def _round_up(x, m):
    return ((x + m - 1) // m) * m


def _cdiv(a, b):
    return (a + b - 1) // b


def _num_tensorcores():
    """Best-effort query of TensorCores per chip (v7x has 2, v5e/v6e have 1)."""
    try:
        info = pltpu.get_tpu_info()
        for name in ("tensorcores_per_chip", "num_tensorcores", "num_cores",
                     "cores_per_chip"):
            v = getattr(info, name, None)
            if isinstance(v, int) and v > 0:
                return v
    except Exception:
        pass
    return 1


_NUM_TC = _num_tensorcores()


def _pick_tile(B, tb_max, num_cores):
    """Pick the batch tile.

    Single-TC chips: one tile as large as possible (fewer pipeline steps).
    Dual-TC chips (v7x): choose the tile so the number of parallel grid steps
    is a multiple of the core count, balancing work across TensorCores.
    VMEM is not the binding constraint here (a few MiB per step at most).
    """
    tb = min(tb_max, _round_up(B, 8))
    if num_cores > 1 and B > 256:
        steps = _round_up(_cdiv(B, tb), num_cores)
        tb = _round_up(_cdiv(B, steps), 8)
    return max(tb, 8)


def _mlp_kernel(x_ref, w1_ref, b1_ref, w2_ref, b2_ref, w3_ref, b3_ref, o_ref):
    """Fused 3-layer MLP forward for one batch tile (all tiles in VMEM).

    Dropout layers are identity in eval mode (PyTorch nn.Dropout at inference).
    """
    x = x_ref[...]                                              # (tb, 85)

    # fc1 + ReLU (K=85 contraction; Mosaic masks the padded contraction lanes)
    h1 = jnp.dot(x, w1_ref[...], preferred_element_type=jnp.float32)
    h1 = jnp.maximum(h1 + b1_ref[...], 0.0)                     # (tb, 128)

    # TODO(synk): training-mode dropout (p=0.15) would use pltpu.prng_random_bits;
    # eval-mode dropout is identity, which is what we implement here.

    # fc2 + ReLU
    h2 = jnp.dot(h1, w2_ref[...], preferred_element_type=jnp.float32)
    h2 = jnp.maximum(h2 + b2_ref[...], 0.0)                     # (tb, 64)

    # fc3 (true 2-wide output; narrow-N matmul is masked by Mosaic)
    out = jnp.dot(h2, w3_ref[...], preferred_element_type=jnp.float32)
    out = out + b3_ref[...]                                     # (tb, 2)

    o_ref[...] = out.astype(o_ref.dtype)


@functools.partial(jax.jit, static_argnames=("tb_max",))
def net_forward(x, w1, b1, w2, b2, w3, b3, *, tb_max=1024):
    """Runs the fused MLP. x: (B, 85) float32 -> (B, 2) float32."""
    B = x.shape[0]
    tb = _pick_tile(B, tb_max, _NUM_TC)
    grid = (_cdiv(B, tb),)

    # Biases kept 2-D (1, features) so they live as proper lane-major tiles.
    b1_2d = b1.reshape(1, H1)
    b2_2d = b2.reshape(1, H2)
    b3_2d = b3.reshape(1, OUT_DIM)

    out = pl.pallas_call(
        _mlp_kernel,
        out_shape=jax.ShapeDtypeStruct((B, OUT_DIM), jnp.float32),
        grid_spec=pltpu.PrefetchScalarGridSpec(
            num_scalar_prefetch=0,
            grid=grid,
            in_specs=[
                # batch-tiled input, true feature width (partial last block OK)
                pl.BlockSpec((tb, IN_DIM), lambda i: (i, 0)),
                # weights / biases: full arrays, same block index every step
                # (constant index_map -> not re-DMA'd on consecutive steps)
                pl.BlockSpec((IN_DIM, H1), lambda i: (0, 0)),
                pl.BlockSpec((1, H1), lambda i: (0, 0)),
                pl.BlockSpec((H1, H2), lambda i: (0, 0)),
                pl.BlockSpec((1, H2), lambda i: (0, 0)),
                pl.BlockSpec((H2, OUT_DIM), lambda i: (0, 0)),
                pl.BlockSpec((1, OUT_DIM), lambda i: (0, 0)),
            ],
            out_specs=pl.BlockSpec((tb, OUT_DIM), lambda i: (i, 0)),
        ),
        compiler_params=pltpu.CompilerParams(
            dimension_semantics=("parallel",),
        ),
    )(x, w1, b1_2d, w2, b2_2d, w3, b3_2d)

    return out


def init_params(key):
    """Deterministic init mirroring PyTorch nn.Linear default:
    U(-1/sqrt(fan_in), 1/sqrt(fan_in)) for both weight and bias."""
    ks = jax.random.split(key, 6)

    def linear(kw, kb, fan_in, fan_out):
        bound = 1.0 / jnp.sqrt(fan_in)
        w = jax.random.uniform(kw, (fan_in, fan_out), jnp.float32, -bound, bound)
        b = jax.random.uniform(kb, (fan_out,), jnp.float32, -bound, bound)
        return w, b

    w1, b1 = linear(ks[0], ks[1], IN_DIM, H1)
    w2, b2 = linear(ks[2], ks[3], H1, H2)
    w3, b3 = linear(ks[4], ks[5], H2, OUT_DIM)
    return w1, b1, w2, b2, w3, b3


def reference_forward(x, w1, b1, w2, b2, w3, b3):
    h = jnp.maximum(x @ w1 + b1, 0.0)
    h = jnp.maximum(h @ w2 + b2, 0.0)
    return h @ w3 + b3


if __name__ == "__main__":
    key = jax.random.PRNGKey(0)
    kx, kp = jax.random.split(key)

    params = init_params(kp)

    # Small batch (single tile, exact fit).
    B = 8
    x = jax.random.normal(kx, (B, IN_DIM), dtype=jnp.float32)
    out = jax.block_until_ready(net_forward(x, *params))
    ref = reference_forward(x, *params)
    assert out.shape == (B, OUT_DIM)
    assert jnp.allclose(out, ref, atol=1e-4, rtol=1e-4), "mismatch vs reference (B=8)"

    # Non-multiple batch, single grid step with a partial block.
    B1 = 333
    x1 = jax.random.normal(kx, (B1, IN_DIM), dtype=jnp.float32)
    out1 = jax.block_until_ready(net_forward(x1, *params))
    ref1 = reference_forward(x1, *params)
    assert out1.shape == (B1, OUT_DIM)
    assert jnp.allclose(out1, ref1, atol=1e-4, rtol=1e-4), "mismatch vs reference (B=333)"

    # Larger, non-multiple batch: multi-step grid + partial final block
    # (and balanced step count on dual-TC chips).
    B2 = 2500
    x2 = jax.random.normal(kx, (B2, IN_DIM), dtype=jnp.float32)
    out2 = jax.block_until_ready(net_forward(x2, *params))
    ref2 = reference_forward(x2, *params)
    assert out2.shape == (B2, OUT_DIM)
    assert jnp.allclose(out2, ref2, atol=1e-4, rtol=1e-4), "mismatch vs reference (B=2500)"

    print("KERNEL_OK")
</pallas_src>

<mosaic_0001>
module attributes {stable_mosaic.version = 11 : i64} {
  func.func @_mlp_kernel(%arg0: i32, %arg1: memref<8x85xf32, #tpu.memory_space<vmem>>, %arg2: memref<85x128xf32, #tpu.memory_space<vmem>>, %arg3: memref<1x128xf32, #tpu.memory_space<vmem>>, %arg4: memref<128x64xf32, #tpu.memory_space<vmem>>, %arg5: memref<1x64xf32, #tpu.memory_space<vmem>>, %arg6: memref<64x2xf32, #tpu.memory_space<vmem>>, %arg7: memref<1x2xf32, #tpu.memory_space<vmem>>, %arg8: memref<8x2xf32, #tpu.memory_space<vmem>>) attributes {dimension_semantics = [#tpu.dimension_semantics<parallel>], iteration_bounds = array<i64: 1>, scalar_prefetch = 0 : i64, scratch_operands = 0 : i64, tpu.core_type = #tpu.core_type<tc>, window_params = [{transform_indices = @transform_0, window_bounds = array<i64: 8, 85>}, {pipeline_mode = #tpu.pipeline_mode<synchronous>, transform_indices = @transform_1, window_bounds = array<i64: 85, 128>}, {pipeline_mode = #tpu.pipeline_mode<synchronous>, transform_indices = @transform_2, window_bounds = array<i64: 1, 128>}, {pipeline_mode = #tpu.pipeline_mode<synchronous>, transform_indices = @transform_3, window_bounds = array<i64: 128, 64>}, {pipeline_mode = #tpu.pipeline_mode<synchronous>, transform_indices = @transform_4, window_bounds = array<i64: 1, 64>}, {pipeline_mode = #tpu.pipeline_mode<synchronous>, transform_indices = @transform_5, window_bounds = array<i64: 64, 2>}, {pipeline_mode = #tpu.pipeline_mode<synchronous>, transform_indices = @transform_6, window_bounds = array<i64: 1, 2>}, {transform_indices = @transform_7, window_bounds = array<i64: 8, 2>}]} {
    %c0 = arith.constant 0 : index
    %c0_0 = arith.constant 0 : index
    %0 = vector.load %arg1[%c0, %c0_0] : memref<8x85xf32, #tpu.memory_space<vmem>>, vector<8x85xf32>
    %c0_1 = arith.constant 0 : index
    %c0_2 = arith.constant 0 : index
    %1 = vector.load %arg2[%c0_1, %c0_2] : memref<85x128xf32, #tpu.memory_space<vmem>>, vector<85x128xf32>
    %cst = arith.constant dense<0.000000e+00> : vector<8x128xf32>
    %2 = tpu.matmul %0, %1, %cst {dimension_numbers = #tpu.dot_dimension_numbers<[1], [0], [0], [1], [0, 0, 1, 1], [], []>} : vector<8x85xf32>, vector<85x128xf32>, vector<8x128xf32> -> vector<8x128xf32>
    %c0_3 = arith.constant 0 : index
    %c0_4 = arith.constant 0 : index
    %3 = vector.load %arg3[%c0_3, %c0_4] : memref<1x128xf32, #tpu.memory_space<vmem>>, vector<1x128xf32>
    %4 = vector.broadcast %3 : vector<1x128xf32> to vector<8x128xf32>
    %5 = arith.addf %2, %4 : vector<8x128xf32>
    %cst_5 = arith.constant 0.000000e+00 : f32
    %6 = vector.broadcast %cst_5 : f32 to vector<8x128xf32>
    %7 = arith.maximumf %5, %6 : vector<8x128xf32>
    %c0_6 = arith.constant 0 : index
    %c0_7 = arith.constant 0 : index
    %8 = vector.load %arg4[%c0_6, %c0_7] : memref<128x64xf32, #tpu.memory_space<vmem>>, vector<128x64xf32>
    %cst_8 = arith.constant dense<0.000000e+00> : vector<8x64xf32>
    %9 = tpu.matmul %7, %8, %cst_8 {dimension_numbers = #tpu.dot_dimension_numbers<[1], [0], [0], [1], [0, 0, 1, 1], [], []>} : vector<8x128xf32>, vector<128x64xf32>, vector<8x64xf32> -> vector<8x64xf32>
    %c0_9 = arith.constant 0 : index
    %c0_10 = arith.constant 0 : index
    %10 = vector.load %arg5[%c0_9, %c0_10] : memref<1x64xf32, #tpu.memory_space<vmem>>, vector<1x64xf32>
    %11 = vector.broadcast %10 : vector<1x64xf32> to vector<8x64xf32>
    %12 = arith.addf %9, %11 : vector<8x64xf32>
    %cst_11 = arith.constant 0.000000e+00 : f32
    %13 = vector.broadcast %cst_11 : f32 to vector<8x64xf32>
    %14 = arith.maximumf %12, %13 : vector<8x64xf32>
    %c0_12 = arith.constant 0 : index
    %c0_13 = arith.constant 0 : index
    %15 = vector.load %arg6[%c0_12, %c0_13] : memref<64x2xf32, #tpu.memory_space<vmem>>, vector<64x2xf32>
    %cst_14 = arith.constant dense<0.000000e+00> : vector<8x2xf32>
    %16 = tpu.matmul %14, %15, %cst_14 {dimension_numbers = #tpu.dot_dimension_numbers<[1], [0], [0], [1], [0, 0, 1, 1], [], []>} : vector<8x64xf32>, vector<64x2xf32>, vector<8x2xf32> -> vector<8x2xf32>
    %c0_15 = arith.constant 0 : index
    %c0_16 = arith.constant 0 : index
    %17 = vector.load %arg7[%c0_15, %c0_16] : memref<1x2xf32, #tpu.memory_space<vmem>>, vector<1x2xf32>
    %18 = vector.broadcast %17 : vector<1x2xf32> to vector<8x2xf32>
    %19 = arith.addf %16, %18 : vector<8x2xf32>
    %c0_17 = arith.constant 0 : index
    %c0_18 = arith.constant 0 : index
    %20 = vector.load %arg8[%c0_17, %c0_18] : memref<8x2xf32, #tpu.memory_space<vmem>>, vector<8x2xf32>
    tpu.vector_store %arg8[%c0_17, %c0_18], %19 {strides = array<i32>} : memref<8x2xf32, #tpu.memory_space<vmem>>, vector<8x2xf32>,
    return
  }
  func.func @transform_0(%arg0: i32) -> (i32, i32) {
    %c0_i32 = arith.constant 0 : i32
    %c0_i32_0 = arith.constant 0 : i32
    return %arg0, %c0_i32 : i32, i32
  }
  func.func @transform_1(%arg0: i32) -> (i32, i32) {
    %c0_i32 = arith.constant 0 : i32
    %c0_i32_0 = arith.constant 0 : i32
    %c0_i32_1 = arith.constant 0 : i32
    return %c0_i32, %c0_i32_0 : i32, i32
  }
  func.func @transform_2(%arg0: i32) -> (i32, i32) {
    %c0_i32 = arith.constant 0 : i32
    %c0_i32_0 = arith.constant 0 : i32
    %c0_i32_1 = arith.constant 0 : i32
    return %c0_i32, %c0_i32_0 : i32, i32
  }
  func.func @transform_3(%arg0: i32) -> (i32, i32) {
    %c0_i32 = arith.constant 0 : i32
    %c0_i32_0 = arith.constant 0 : i32
    %c0_i32_1 = arith.constant 0 : i32
    return %c0_i32, %c0_i32_0 : i32, i32
  }
  func.func @transform_4(%arg0: i32) -> (i32, i32) {
    %c0_i32 = arith.constant 0 : i32
    %c0_i32_0 = arith.constant 0 : i32
    %c0_i32_1 = arith.constant 0 : i32
    return %c0_i32, %c0_i32_0 : i32, i32
  }
  func.func @transform_5(%arg0: i32) -> (i32, i32) {
    %c0_i32 = arith.constant 0 : i32
    %c0_i32_0 = arith.constant 0 : i32
    %c0_i32_1 = arith.constant 0 : i32
    return %c0_i32, %c0_i32_0 : i32, i32
  }
  func.func @transform_6(%arg0: i32) -> (i32, i32) {
    %c0_i32 = arith.constant 0 : i32
    %c0_i32_0 = arith.constant 0 : i32
    %c0_i32_1 = arith.constant 0 : i32
    return %c0_i32, %c0_i32_0 : i32, i32
  }
  func.func @transform_7(%arg0: i32) -> (i32, i32) {
    %c0_i32 = arith.constant 0 : i32
    %c0_i32_0 = arith.constant 0 : i32
    return %arg0, %c0_i32 : i32, i32
  }
}

</mosaic_0001>

<llo_original>
// kernel: net_forward.1
$region0: #{net_forward.1}
  #allocation0 [shape = 'u32[]', space=smem, size = 0x4, offset = 0x4, fixed_abs, tag = 'smem constant byte address 0x4 - core index']
  #allocation1 [shape = 'u32[72,128]{1,0:T(1,128)}', space=vmem, size = 0x9000, scoped, tag = 'internal scratch']
  %s0 = inlined_call_operand.vmem [shape: f32[8,85], index: 0, kind: input, shape index: {}]
  %s1 = inlined_call_operand.vmem [shape: f32[85,128], index: 1, kind: input, shape index: {}]
  %s2 = inlined_call_operand.vmem [shape: f32[1,128], index: 2, kind: input, shape index: {}]
  %s3 = inlined_call_operand.vmem [shape: f32[128,64], index: 3, kind: input, shape index: {}]
  %s4 = inlined_call_operand.vmem [shape: f32[1,64], index: 4, kind: input, shape index: {}]
  %s5 = inlined_call_operand.vmem [shape: f32[64,2], index: 5, kind: input, shape index: {}]
  %s6 = inlined_call_operand.vmem [shape: f32[1,2], index: 6, kind: input, shape index: {}]
  %s7 = inlined_call_operand.vmem [shape: f32[8,2], index: 7, kind: output, shape index: {}]
  %s8 = sld [smem:[#allocation0]]
  $region38: #{net_forward.1} parent=0
    _
  %s10 = ssub.s32 1, %s8
  %s11 = scalar_select 0, %s10, %s8
  // Predicated region
  $region2: #{net_forward.1} parent=0 // pred_check
    _
  $region3: #{net_forward.1} parent=0 // pred_check_branch
    %13 = sbr.rel (0) target = $region5
  $region4: #{net_forward.1} parent=0 // pred_region
    _
  $region5: #{net_forward.1} parent=0 // pred_fallthru
    _
  // Predicated region
  $region6: #{net_forward.1} parent=0 // pred_check
    _
  $region7: #{net_forward.1} parent=0 // pred_check_branch
    %15 = sbr.rel (0) target = $region9
  $region8: #{net_forward.1} parent=0 // pred_region
    _
  $region9: #{net_forward.1} parent=0 // pred_fallthru
    _
  // Predicated region
  $region10: #{net_forward.1} parent=0 // pred_check
    _
  $region11: #{net_forward.1} parent=0 // pred_check_branch
    %17 = sbr.rel (0) target = $region13
  $region12: #{net_forward.1} parent=0 // pred_region
    _
  $region13: #{net_forward.1} parent=0 // pred_fallthru
    _
  // Predicated region
  $region14: #{net_forward.1} parent=0 // pred_check
    _
  $region15: #{net_forward.1} parent=0 // pred_check_branch
    %19 = sbr.rel (0) target = $region17
  $region16: #{net_forward.1} parent=0 // pred_region
    _
  $region17: #{net_forward.1} parent=0 // pred_fallthru
    _
  // Predicated region
  $region18: #{net_forward.1} parent=0 // pred_check
    _
  $region19: #{net_forward.1} parent=0 // pred_check_branch
    %21 = sbr.rel (0) target = $region21
  $region20: #{net_forward.1} parent=0 // pred_region
    _
  $region21: #{net_forward.1} parent=0 // pred_fallthru
    _
  // Predicated region
  $region22: #{net_forward.1} parent=0 // pred_check
    _
  $region23: #{net_forward.1} parent=0 // pred_check_branch
    %23 = sbr.rel (0) target = $region25
  $region24: #{net_forward.1} parent=0 // pred_region
    _
  $region25: #{net_forward.1} parent=0 // pred_fallthru
    _
  // Predicated region
  $region26: #{net_forward.1} parent=0 // pred_check
    _
  $region27: #{net_forward.1} parent=0 // pred_check_branch
    %25 = sbr.rel (0) target = $region29
  $region28: #{net_forward.1} parent=0 // pred_region
    _
  $region29: #{net_forward.1} parent=0 // pred_fallthru
    _
  %v26 = vld [vmem:[%s0] sm:$0xff]
  %v27 = vld [vmem:[%s1] sm:$0xff]
  %v28 = vld [vmem:[%s1 + $0x8] sm:$0xff]
  %v29 = vld [vmem:[%s1 + $0x10] sm:$0xff]
  %v30 = vld [vmem:[%s1 + $0x18] sm:$0xff]
  %v31 = vld [vmem:[%s1 + $0x20] sm:$0xff]
  %v32 = vld [vmem:[%s1 + $0x28] sm:$0xff]
  %v33 = vld [vmem:[%s1 + $0x30] sm:$0xff]
  %v34 = vld [vmem:[%s1 + $0x38] sm:$0xff]
  %v35 = vld [vmem:[%s1 + $0x40] sm:$0xff]
  %v36 = vld [vmem:[%s1 + $0x48] sm:$0xff]
  %v37 = vld [vmem:[%s1 + $0x50] sm:$0x1f]
  %v38 = vld [vmem:[%s2] sm:$0x1]
  %v40 = vperm.slane %v38, 0
  %vm42 = vcmask 695296
  %v44 = vsel %vm42, %v26, 0
  %vm46 = vcmask 1044480
  %v48 = vsel %vm46, %v37, 0
  %50 = vmatpush.msra.mxu0 0.0
  %51 = vmatpush.msra.mxu0 0.0
  %52 = vmatpush.msra.mxu0 0.0
  %53 = vmatpush.msra.mxu0 0.0
  %54 = vmatpush.msra.mxu0 0.0
  %55 = vmatpush.msra.mxu0 %v48
  %56 = vmatpush.msra.mxu0 %v36
  %57 = vmatpush.msra.mxu0 %v35
  %58 = vmatpush.msra.mxu0 %v34
  %59 = vmatpush.msra.mxu0 %v33
  %60 = vmatpush.msra.mxu0 %v32
  %61 = vmatpush.msra.mxu0 %v31
  %62 = vmatpush.msra.mxu0 %v30
  %63 = vmatpush.msra.mxu0 %v29
  %64 = vmatpush.msra.mxu0 %v28
  %65 = vmatpush.msra.mxu0 %v27
  %66 = vmatmul.f32.gmra.mxu0 %v44
  %v67 = vpop.f32.mrf.mxu0
  %v68 = vadd.f32 %v40, %v67
  %69 = vdwg.mxu0
  %v70 = vmax.f32 %v68, 0.0
  %v71 = vld [vmem:[%s3] sm:$0xff]
  %v72 = vld [vmem:[%s3 + $0x8] sm:$0xff]
  %v73 = vld [vmem:[%s3 + $0x10] sm:$0xff]
  %v74 = vld [vmem:[%s3 + $0x18] sm:$0xff]
  %v75 = vld [vmem:[%s3 + $0x20] sm:$0xff]
  %v76 = vld [vmem:[%s3 + $0x28] sm:$0xff]
  %v77 = vld [vmem:[%s3 + $0x30] sm:$0xff]
  %v78 = vld [vmem:[%s3 + $0x38] sm:$0xff]
  %v79 = vld [vmem:[%s3 + $0x40] sm:$0xff]
  %v80 = vld [vmem:[%s3 + $0x48] sm:$0xff]
  %v81 = vld [vmem:[%s3 + $0x50] sm:$0xff]
  %v82 = vld [vmem:[%s3 + $0x58] sm:$0xff]
  %v83 = vld [vmem:[%s3 + $0x60] sm:$0xff]
  %v84 = vld [vmem:[%s3 + $0x68] sm:$0xff]
  %v85 = vld [vmem:[%s3 + $0x70] sm:$0xff]
  %v86 = vld [vmem:[%s3 + $0x78] sm:$0xff]
  %v87 = vld [vmem:[%s4] sm:$0x1]
  %v89 = vperm.slane %v87, 0
  %91 = vmatpush.msra.mxu0 %v86
  %92 = vmatpush.msra.mxu0 %v85
  %93 = vmatpush.msra.mxu0 %v84
  %94 = vmatpush.msra.mxu0 %v83
  %95 = vmatpush.msra.mxu0 %v82
  %96 = vmatpush.msra.mxu0 %v81
  %97 = vmatpush.msra.mxu0 %v80
  %98 = vmatpush.msra.mxu0 %v79
  %99 = vmatpush.msra.mxu0 %v78
  %100 = vmatpush.msra.mxu0 %v77
  %101 = vmatpush.msra.mxu0 %v76
  %102 = vmatpush.msra.mxu0 %v75
  %103 = vmatpush.msra.mxu0 %v74
  %104 = vmatpush.msra.mxu0 %v73
  %105 = vmatpush.msra.mxu0 %v72
  %106 = vmatpush.msra.mxu0 %v71
  %107 = vmatmul.f32.gmra.mxu0 %v70
  %v108 = vpop.f32.mrf.mxu0
  %v109 = vadd.f32 %v89, %v108
  %110 = vdwg.mxu0
  %v111 = vmax.f32 %v109, 0.0
  %v112 = vld [vmem:[%s5] sm:$0xff]
  %v113 = vld [vmem:[%s5 + $0x8] sm:$0xff]
  %v114 = vld [vmem:[%s5 + $0x10] sm:$0xff]
  %v115 = vld [vmem:[%s5 + $0x18] sm:$0xff]
  %v116 = vld [vmem:[%s5 + $0x20] sm:$0xff]
  %v117 = vld [vmem:[%s5 + $0x28] sm:$0xff]
  %v118 = vld [vmem:[%s5 + $0x30] sm:$0xff]
  %v119 = vld [vmem:[%s5 + $0x38] sm:$0xff]
  %v120 = vld [vmem:[%s6] sm:$0x1]
  %v122 = vperm.slane %v120, 0
  %vm124 = vcmask 523264
  %v126 = vsel %vm124, %v111, 0
  %128 = vmatpush.msra.mxu0 0.0
  %129 = vmatpush.msra.mxu0 0.0
  %130 = vmatpush.msra.mxu0 0.0
  %131 = vmatpush.msra.mxu0 0.0
  %132 = vmatpush.msra.mxu0 0.0
  %133 = vmatpush.msra.mxu0 0.0
  %134 = vmatpush.msra.mxu0 0.0
  %135 = vmatpush.msra.mxu0 0.0
  %136 = vmatpush.msra.mxu0 %v119
  %137 = vmatpush.msra.mxu0 %v118
  %138 = vmatpush.msra.mxu0 %v117
  %139 = vmatpush.msra.mxu0 %v116
  %140 = vmatpush.msra.mxu0 %v115
  %141 = vmatpush.msra.mxu0 %v114
  %142 = vmatpush.msra.mxu0 %v113
  %143 = vmatpush.msra.mxu0 %v112
  %144 = vmatmul.f32.gmra.mxu0 %v126
  %v145 = vpop.f32.mrf.mxu0
  %v146 = vadd.f32 %v122, %v145
  %147 = vdwg.mxu0
  %vm148 = vcmask 15360
  %149 = vst.msk [vmem:[%s7] sm:$0xff] %vm148, %v146
  // Predicated region
  $region30: #{net_forward.1} parent=0 // pred_check
    _
  $region31: #{net_forward.1} parent=0 // pred_check_branch
    %151 = sbr.rel (0) target = $region33
  $region32: #{net_forward.1} parent=0 // pred_region
    _
  $region33: #{net_forward.1} parent=0 // pred_fallthru
    _
  // Predicated region
  $region34: #{net_forward.1} parent=0 // pred_check
    _
  $region35: #{net_forward.1} parent=0 // pred_check_branch
    %153 = sbr.rel (0) target = $region37
  $region36: #{net_forward.1} parent=0 // pred_region
    _
  $region37: #{net_forward.1} parent=0 // pred_fallthru
    _

</llo_original>
